<compile_context>
chip_gen: v6e
topology: v6e:2x2x1
jax: 0.10.0
libtpu: 0.0.40
codegen_flags: <defaults>
</compile_context>

<pallas_src>
import functools

import jax
import jax.numpy as jnp
import numpy as np
from jax import lax
from jax.experimental import pallas as pl
from jax.experimental.pallas import tpu as pltpu


def bilstm_kernel(gx_ref, whh_ref, of_ref, ob_ref, h_sc, c_sc,
                  *, hidden_dim, batch, chunk):
    """One grid step = one chunk of `chunk` timesteps, both directions fused.

    gx_ref : (chunk, 2B, 4H)  precomputed x@W_ih + bias; rows :B fwd, rows B: bwd
                              (backward rows are already in reversed-time order)
    whh_ref: (H, 8H)          [W_hh_f | W_hh_b] concatenated on the output axis
    of_ref : (chunk, B, H)    forward outputs for this chunk (original time order)
    ob_ref : (chunk, B, H)    backward outputs, written into block C-1-c reversed
    h_sc   : (2B, H)          stacked hidden state, persists across grid steps
    c_sc   : (2B, H)          stacked cell state,   persists across grid steps
    """
    cidx = pl.program_id(0)
    H = hidden_dim
    B = batch

    @pl.when(cidx == 0)
    def _init():
        h_sc[...] = jnp.zeros_like(h_sc)
        c_sc[...] = jnp.zeros_like(c_sc)

    # Weights are grid-resident; load once per chunk.
    whh = whh_ref[...]  # (H, 8H)

    # Hoisted out of the inner loop (JAX does not CSE broadcasts/iota per iter):
    # row r < B -> forward direction -> use gate columns [:4H] of h@whh,
    # row r >= B -> backward direction -> use gate columns [4H:].
    fwd_mask = lax.broadcasted_iota(jnp.int32, (2 * B, 4 * H), 0) < B

    def step(tt, carry):
        gx = gx_ref[tt]            # (2B, 4H)  input gates for this timestep
        h = h_sc[...]              # (2B, H)
        c_prev = c_sc[...]         # (2B, H)

        # Single MXU matmul for both directions on the serial critical path.
        gh = jnp.dot(h, whh, preferred_element_type=jnp.float32)   # (2B, 8H)
        gh_sel = jnp.where(fwd_mask, gh[:, : 4 * H], gh[:, 4 * H:])  # (2B, 4H)
        gates = gx + gh_sel

        # PyTorch gate order (i, f, g, o).  With toy H=32 these are 32-lane
        # slices; for production pad H to a multiple of 128.
        i = jax.nn.sigmoid(gates[:, 0 * H:1 * H])
        f = jax.nn.sigmoid(gates[:, 1 * H:2 * H])
        g = jnp.tanh(gates[:, 2 * H:3 * H])
        o = jax.nn.sigmoid(gates[:, 3 * H:4 * H])

        c_new = f * c_prev + i * g
        h_new = o * jnp.tanh(c_new)

        h_sc[...] = h_new
        c_sc[...] = c_new

        # Forward rows -> forward-time slot; backward rows -> reversed slot so
        # that (with the C-1-c block map) ob ends up in original time order.
        of_ref[tt] = h_new[:B].astype(of_ref.dtype)
        ob_ref[chunk - 1 - tt] = h_new[B:].astype(ob_ref.dtype)
        return carry

    lax.fori_loop(0, chunk, step, 0, unroll=True)


def _pick_chunk(T, max_chunk=8):
    for c in range(min(T, max_chunk), 0, -1):
        if T % c == 0:
            return c
    return 1


def bilstm_forward(x, params, *, chunk=None):
    """x: (B, T, D) float32.  Returns (B, T, 2*H) float32 (fwd | bwd)."""
    B, T, D = x.shape
    H = params["w_hh_f"].shape[1] // 4  # w_hh_t is (H, 4H)

    if chunk is None:
        chunk = _pick_chunk(T)
    assert T % chunk == 0, (T, chunk)
    num_chunks = T // chunk

    x_tm = jnp.transpose(x, (1, 0, 2))  # (T, B, D) time-major

    # --- Hoisted input projection: one big matmul per direction, bias folded in.
    gx_f = jnp.einsum("tbd,dg->tbg", x_tm, params["w_ih_f"]) + params["b_f"]
    gx_b = jnp.einsum("tbd,dg->tbg", x_tm[::-1], params["w_ih_b"]) + params["b_b"]
    gx = jnp.concatenate([gx_f, gx_b], axis=1)            # (T, 2B, 4H)

    # Fused recurrent weights: [W_hh_f | W_hh_b] along the output axis.
    whh = jnp.concatenate([params["w_hh_f"], params["w_hh_b"]], axis=1)  # (H, 8H)

    kernel = functools.partial(bilstm_kernel, hidden_dim=H, batch=B, chunk=chunk)

    grid_spec = pltpu.PrefetchScalarGridSpec(
        num_scalar_prefetch=0,
        grid=(num_chunks,),
        in_specs=[
            # Precomputed input gates: one time-chunk per grid step.
            pl.BlockSpec((chunk, 2 * B, 4 * H), lambda c: (c, 0, 0)),
            # Recurrent weights: full array, resident across the grid.
            pl.BlockSpec((H, 8 * H), lambda c: (0, 0)),
        ],
        out_specs=[
            # Forward outputs: chunk c in forward time order.
            pl.BlockSpec((chunk, B, H), lambda c: (c, 0, 0)),
            # Backward outputs: chunk c maps to block C-1-c (kernel reverses
            # within the chunk), so ob is emitted in original time order.
            pl.BlockSpec((chunk, B, H), lambda c: (num_chunks - 1 - c, 0, 0)),
        ],
        scratch_shapes=[
            pltpu.VMEM((2 * B, H), jnp.float32),  # stacked h (fwd rows, bwd rows)
            pltpu.VMEM((2 * B, H), jnp.float32),  # stacked c
        ],
    )

    out_f, out_b = pl.pallas_call(
        kernel,
        out_shape=(
            jax.ShapeDtypeStruct((T, B, H), jnp.float32),
            jax.ShapeDtypeStruct((T, B, H), jnp.float32),
        ),
        grid_spec=grid_spec,
        compiler_params=pltpu.CompilerParams(
            # The h->h recurrence is inherently serial: grid must run in order.
            dimension_semantics=("arbitrary",),
        ),
    )(gx, whh)

    # Back to batch_first and concat [forward, backward] along features,
    # matching torch: out[:, :, :H] = forward, out[:, :, H:] = backward.
    out = jnp.concatenate(
        [jnp.transpose(out_f, (1, 0, 2)), jnp.transpose(out_b, (1, 0, 2))],
        axis=-1,
    )
    return out


def init_params(key, input_dim, hidden_dim):
    """Init mimicking nn.LSTM default: U(-1/sqrt(H), 1/sqrt(H)).

    Weights are stored pre-transposed: w_ih_t (D, 4H), w_hh_t (H, 4H),
    bias = b_ih + b_hh folded into a single (1, 4H) row. Gate order (i,f,g,o).
    """
    bound = 1.0 / np.sqrt(hidden_dim)
    keys = jax.random.split(key, 8)

    def u(k, shape):
        return jax.random.uniform(k, shape, jnp.float32, -bound, bound)

    return {
        "w_ih_f": u(keys[0], (input_dim, 4 * hidden_dim)),
        "w_hh_f": u(keys[1], (hidden_dim, 4 * hidden_dim)),
        "b_f": u(keys[2], (1, 4 * hidden_dim)) + u(keys[3], (1, 4 * hidden_dim)),
        "w_ih_b": u(keys[4], (input_dim, 4 * hidden_dim)),
        "w_hh_b": u(keys[5], (hidden_dim, 4 * hidden_dim)),
        "b_b": u(keys[6], (1, 4 * hidden_dim)) + u(keys[7], (1, 4 * hidden_dim)),
    }


def _lstm_cell_ref(x, h, c, w_ih_t, w_hh_t, bias, H):
    gates = (jnp.dot(x, w_ih_t, preferred_element_type=jnp.float32)
             + jnp.dot(h, w_hh_t, preferred_element_type=jnp.float32) + bias)
    i = jax.nn.sigmoid(gates[:, 0 * H:1 * H])
    f = jax.nn.sigmoid(gates[:, 1 * H:2 * H])
    g = jnp.tanh(gates[:, 2 * H:3 * H])
    o = jax.nn.sigmoid(gates[:, 3 * H:4 * H])
    c_new = f * c + i * g
    h_new = o * jnp.tanh(c_new)
    return h_new, c_new


def bilstm_reference(x, params):
    """Pure-JAX reference (same math as nn.LSTM forward) for correctness."""
    B, T, D = x.shape
    H = params["w_hh_f"].shape[1] // 4

    def scan_dir(xs, w_ih, w_hh, b):
        def step(carry, x_t):
            h, c = carry
            h_new, c_new = _lstm_cell_ref(x_t, h, c, w_ih, w_hh, b, H)
            return (h_new, c_new), h_new
        init = (jnp.zeros((B, H), jnp.float32), jnp.zeros((B, H), jnp.float32))
        _, hs = jax.lax.scan(step, init, xs)
        return hs  # (T, B, H)

    x_tm = jnp.transpose(x, (1, 0, 2))
    hs_f = scan_dir(x_tm, params["w_ih_f"], params["w_hh_f"], params["b_f"])
    hs_b = scan_dir(x_tm[::-1], params["w_ih_b"], params["w_hh_b"], params["b_b"])[::-1]
    return jnp.concatenate(
        [jnp.transpose(hs_f, (1, 0, 2)), jnp.transpose(hs_b, (1, 0, 2))], axis=-1)


if __name__ == "__main__":
    B, T, D, H = 2, 8, 16, 32

    key = jax.random.PRNGKey(0)
    k_x, k_p = jax.random.split(key)
    x = jax.random.normal(k_x, (B, T, D), dtype=jnp.float32)
    params = init_params(k_p, D, H)

    # chunk=4 -> grid of 2 chunks: exercises both the inner unrolled loop and
    # the cross-chunk state carry / reversed backward block mapping.
    out = bilstm_forward(x, params, chunk=4)
    out = jax.block_until_ready(out)
    assert out.shape == (B, T, 2 * H), out.shape

    ref = jax.block_until_ready(bilstm_reference(x, params))
    np.testing.assert_allclose(np.asarray(out), np.asarray(ref), rtol=1e-4, atol=2e-5)

    print("KERNEL_OK")
</pallas_src>

<mosaic_0001>
module attributes {stable_mosaic.version = 11 : i64} {
  func.func @bilstm_kernel(%arg0: i32, %arg1: memref<4x4x128xf32, #tpu.memory_space<vmem>>, %arg2: memref<32x256xf32, #tpu.memory_space<vmem>>, %arg3: memref<4x2x32xf32, #tpu.memory_space<vmem>>, %arg4: memref<4x2x32xf32, #tpu.memory_space<vmem>>, %arg5: memref<4x32xf32, #tpu.memory_space<vmem>>, %arg6: memref<4x32xf32, #tpu.memory_space<vmem>>) attributes {dimension_semantics = [#tpu.dimension_semantics<arbitrary>], iteration_bounds = array<i64: 2>, scalar_prefetch = 0 : i64, scratch_operands = 2 : i64, tpu.core_type = #tpu.core_type<tc>, window_params = [{transform_indices = @transform_0, window_bounds = array<i64: 4, 4, 128>}, {pipeline_mode = #tpu.pipeline_mode<synchronous>, transform_indices = @transform_1, window_bounds = array<i64: 32, 256>}, {transform_indices = @transform_2, window_bounds = array<i64: 4, 2, 32>}, {transform_indices = @transform_3, window_bounds = array<i64: 4, 2, 32>}]} {
    %c0_i32 = arith.constant 0 : i32
    %0 = arith.cmpi eq, %arg0, %c0_i32 : i32
    %1 = arith.extui %0 : i1 to i32
    %c0_i32_0 = arith.constant 0 : i32
    %2 = arith.cmpi ne, %1, %c0_i32_0 : i32
    scf.if %2 {
      %cst_79 = arith.constant 0.000000e+00 : f32
      %199 = vector.broadcast %cst_79 : f32 to vector<4x32xf32>
      %c0_80 = arith.constant 0 : index
      %c0_81 = arith.constant 0 : index
      %200 = vector.load %arg5[%c0_80, %c0_81] : memref<4x32xf32, #tpu.memory_space<vmem>>, vector<4x32xf32>
      tpu.vector_store %arg5[%c0_80, %c0_81], %199 {strides = array<i32>} : memref<4x32xf32, #tpu.memory_space<vmem>>, vector<4x32xf32>,
      %cst_82 = arith.constant 0.000000e+00 : f32
      %201 = vector.broadcast %cst_82 : f32 to vector<4x32xf32>
      %c0_83 = arith.constant 0 : index
      %c0_84 = arith.constant 0 : index
      %202 = vector.load %arg6[%c0_83, %c0_84] : memref<4x32xf32, #tpu.memory_space<vmem>>, vector<4x32xf32>
      tpu.vector_store %arg6[%c0_83, %c0_84], %201 {strides = array<i32>} : memref<4x32xf32, #tpu.memory_space<vmem>>, vector<4x32xf32>,
    } else {
    }
    %c0 = arith.constant 0 : index
    %c0_1 = arith.constant 0 : index
    %3 = vector.load %arg2[%c0, %c0_1] : memref<32x256xf32, #tpu.memory_space<vmem>>, vector<32x256xf32>
    %4 = tpu.iota {dimensions = array<i32: 0>} : vector<4x128xi32>
    %c2_i32 = arith.constant 2 : i32
    %5 = vector.broadcast %c2_i32 : i32 to vector<4x128xi32>
    %6 = arith.cmpi slt, %4, %5 : vector<4x128xi32>
    %c0_i32_2 = arith.constant 0 : i32
    %7 = arith.index_cast %c0_i32_2 : i32 to index
    %c0_3 = arith.constant 0 : index
    %c0_4 = arith.constant 0 : index
    %8 = vector.load %arg1[%7, %c0_3, %c0_4] : memref<4x4x128xf32, #tpu.memory_space<vmem>>, vector<1x4x128xf32>
    %9 = vector.shape_cast %8 : vector<1x4x128xf32> to vector<4x128xf32>
    %c0_5 = arith.constant 0 : index
    %c0_6 = arith.constant 0 : index
    %10 = vector.load %arg5[%c0_5, %c0_6] : memref<4x32xf32, #tpu.memory_space<vmem>>, vector<4x32xf32>
    %c0_7 = arith.constant 0 : index
    %c0_8 = arith.constant 0 : index
    %11 = vector.load %arg6[%c0_7, %c0_8] : memref<4x32xf32, #tpu.memory_space<vmem>>, vector<4x32xf32>
    %cst = arith.constant dense<0.000000e+00> : vector<4x256xf32>
    %12 = tpu.matmul %10, %3, %cst {dimension_numbers = #tpu.dot_dimension_numbers<[1], [0], [0], [1], [0, 0, 1, 1], [], []>} : vector<4x32xf32>, vector<32x256xf32>, vector<4x256xf32> -> vector<4x256xf32>
    %13 = vector.extract_strided_slice %12 {offsets = [0, 0], sizes = [4, 128], strides = [1, 1]} : vector<4x256xf32> to vector<4x128xf32>
    %14 = vector.extract_strided_slice %12 {offsets = [0, 128], sizes = [4, 128], strides = [1, 1]} : vector<4x256xf32> to vector<4x128xf32>
    %15 = arith.select %6, %13, %14 : vector<4x128xi1>, vector<4x128xf32>
    %16 = arith.addf %9, %15 : vector<4x128xf32>
    %17 = vector.extract_strided_slice %16 {offsets = [0, 0], sizes = [4, 32], strides = [1, 1]} : vector<4x128xf32> to vector<4x32xf32>
    %18 = arith.negf %17 : vector<4x32xf32>
    %19 = math.exp %18 : vector<4x32xf32>
    %cst_9 = arith.constant 1.000000e+00 : f32
    %20 = vector.broadcast %cst_9 : f32 to vector<4x32xf32>
    %21 = arith.addf %20, %19 : vector<4x32xf32>
    %22 = arith.divf %20, %21 : vector<4x32xf32>
    %23 = vector.extract_strided_slice %16 {offsets = [0, 32], sizes = [4, 32], strides = [1, 1]} : vector<4x128xf32> to vector<4x32xf32>
    %24 = arith.negf %23 : vector<4x32xf32>
    %25 = math.exp %24 : vector<4x32xf32>
    %cst_10 = arith.constant 1.000000e+00 : f32
    %26 = vector.broadcast %cst_10 : f32 to vector<4x32xf32>
    %27 = arith.addf %26, %25 : vector<4x32xf32>
    %28 = arith.divf %26, %27 : vector<4x32xf32>
    %29 = vector.extract_strided_slice %16 {offsets = [0, 64], sizes = [4, 32], strides = [1, 1]} : vector<4x128xf32> to vector<4x32xf32>
    %30 = math.tanh %29 : vector<4x32xf32>
    %31 = vector.extract_strided_slice %16 {offsets = [0, 96], sizes = [4, 32], strides = [1, 1]} : vector<4x128xf32> to vector<4x32xf32>
    %32 = arith.negf %31 : vector<4x32xf32>
    %33 = math.exp %32 : vector<4x32xf32>
    %cst_11 = arith.constant 1.000000e+00 : f32
    %34 = vector.broadcast %cst_11 : f32 to vector<4x32xf32>
    %35 = arith.addf %34, %33 : vector<4x32xf32>
    %36 = arith.divf %34, %35 : vector<4x32xf32>
    %37 = arith.mulf %28, %11 : vector<4x32xf32>
    %38 = arith.mulf %22, %30 : vector<4x32xf32>
    %39 = arith.addf %37, %38 : vector<4x32xf32>
    %40 = math.tanh %39 : vector<4x32xf32>
    %41 = arith.mulf %36, %40 : vector<4x32xf32>
    %c0_12 = arith.constant 0 : index
    %c0_13 = arith.constant 0 : index
    %42 = vector.load %arg5[%c0_12, %c0_13] : memref<4x32xf32, #tpu.memory_space<vmem>>, vector<4x32xf32>
    tpu.vector_store %arg5[%c0_12, %c0_13], %41 {strides = array<i32>} : memref<4x32xf32, #tpu.memory_space<vmem>>, vector<4x32xf32>,
    %c0_14 = arith.constant 0 : index
    %c0_15 = arith.constant 0 : index
    %43 = vector.load %arg6[%c0_14, %c0_15] : memref<4x32xf32, #tpu.memory_space<vmem>>, vector<4x32xf32>
    tpu.vector_store %arg6[%c0_14, %c0_15], %39 {strides = array<i32>} : memref<4x32xf32, #tpu.memory_space<vmem>>, vector<4x32xf32>,
    %44 = vector.extract_strided_slice %41 {offsets = [0, 0], sizes = [2, 32], strides = [1, 1]} : vector<4x32xf32> to vector<2x32xf32>
    %45 = arith.index_cast %c0_i32_2 : i32 to index
    %c0_16 = arith.constant 0 : index
    %c0_17 = arith.constant 0 : index
    %46 = vector.load %arg3[%45, %c0_16, %c0_17] : memref<4x2x32xf32, #tpu.memory_space<vmem>>, vector<1x2x32xf32>
    %47 = vector.shape_cast %46 : vector<1x2x32xf32> to vector<2x32xf32>
    %48 = vector.shape_cast %44 : vector<2x32xf32> to vector<1x2x32xf32>
    tpu.vector_store %arg3[%45, %c0_16, %c0_17], %48 {strides = array<i32>} : memref<4x2x32xf32, #tpu.memory_space<vmem>>, vector<1x2x32xf32>,
    %49 = vector.extract_strided_slice %41 {offsets = [2, 0], sizes = [2, 32], strides = [1, 1]} : vector<4x32xf32> to vector<2x32xf32>
    %c3_i32 = arith.constant 3 : i32
    %50 = arith.subi %c3_i32, %c0_i32_2 : i32
    %51 = arith.index_cast %50 : i32 to index
    %c0_18 = arith.constant 0 : index
    %c0_19 = arith.constant 0 : index
    %52 = vector.load %arg4[%51, %c0_18, %c0_19] : memref<4x2x32xf32, #tpu.memory_space<vmem>>, vector<1x2x32xf32>
    %53 = vector.shape_cast %52 : vector<1x2x32xf32> to vector<2x32xf32>
    %54 = vector.shape_cast %49 : vector<2x32xf32> to vector<1x2x32xf32>
    tpu.vector_store %arg4[%51, %c0_18, %c0_19], %54 {strides = array<i32>} : memref<4x2x32xf32, #tpu.memory_space<vmem>>, vector<1x2x32xf32>,
    %c1_i32 = arith.constant 1 : i32
    %55 = arith.index_cast %c1_i32 : i32 to index
    %c0_20 = arith.constant 0 : index
    %c0_21 = arith.constant 0 : index
    %56 = vector.load %arg1[%55, %c0_20, %c0_21] : memref<4x4x128xf32, #tpu.memory_space<vmem>>, vector<1x4x128xf32>
    %57 = vector.shape_cast %56 : vector<1x4x128xf32> to vector<4x128xf32>
    %c0_22 = arith.constant 0 : index
    %c0_23 = arith.constant 0 : index
    %58 = vector.load %arg5[%c0_22, %c0_23] : memref<4x32xf32, #tpu.memory_space<vmem>>, vector<4x32xf32>
    %c0_24 = arith.constant 0 : index
    %c0_25 = arith.constant 0 : index
    %59 = vector.load %arg6[%c0_24, %c0_25] : memref<4x32xf32, #tpu.memory_space<vmem>>, vector<4x32xf32>
    %cst_26 = arith.constant dense<0.000000e+00> : vector<4x256xf32>
    %60 = tpu.matmul %58, %3, %cst_26 {dimension_numbers = #tpu.dot_dimension_numbers<[1], [0], [0], [1], [0, 0, 1, 1], [], []>} : vector<4x32xf32>, vector<32x256xf32>, vector<4x256xf32> -> vector<4x256xf32>
    %61 = vector.extract_strided_slice %60 {offsets = [0, 0], sizes = [4, 128], strides = [1, 1]} : vector<4x256xf32> to vector<4x128xf32>
    %62 = vector.extract_strided_slice %60 {offsets = [0, 128], sizes = [4, 128], strides = [1, 1]} : vector<4x256xf32> to vector<4x128xf32>
    %63 = arith.select %6, %61, %62 : vector<4x128xi1>, vector<4x128xf32>
    %64 = arith.addf %57, %63 : vector<4x128xf32>
    %65 = vector.extract_strided_slice %64 {offsets = [0, 0], sizes = [4, 32], strides = [1, 1]} : vector<4x128xf32> to vector<4x32xf32>
    %66 = arith.negf %65 : vector<4x32xf32>
    %67 = math.exp %66 : vector<4x32xf32>
    %cst_27 = arith.constant 1.000000e+00 : f32
    %68 = vector.broadcast %cst_27 : f32 to vector<4x32xf32>
    %69 = arith.addf %68, %67 : vector<4x32xf32>
    %70 = arith.divf %68, %69 : vector<4x32xf32>
    %71 = vector.extract_strided_slice %64 {offsets = [0, 32], sizes = [4, 32], strides = [1, 1]} : vector<4x128xf32> to vector<4x32xf32>
    %72 = arith.negf %71 : vector<4x32xf32>
    %73 = math.exp %72 : vector<4x32xf32>
    %cst_28 = arith.constant 1.000000e+00 : f32
    %74 = vector.broadcast %cst_28 : f32 to vector<4x32xf32>
    %75 = arith.addf %74, %73 : vector<4x32xf32>
    %76 = arith.divf %74, %75 : vector<4x32xf32>
    %77 = vector.extract_strided_slice %64 {offsets = [0, 64], sizes = [4, 32], strides = [1, 1]} : vector<4x128xf32> to vector<4x32xf32>
    %78 = math.tanh %77 : vector<4x32xf32>
    %79 = vector.extract_strided_slice %64 {offsets = [0, 96], sizes = [4, 32], strides = [1, 1]} : vector<4x128xf32> to vector<4x32xf32>
    %80 = arith.negf %79 : vector<4x32xf32>
    %81 = math.exp %80 : vector<4x32xf32>
    %cst_29 = arith.constant 1.000000e+00 : f32
    %82 = vector.broadcast %cst_29 : f32 to vector<4x32xf32>
    %83 = arith.addf %82, %81 : vector<4x32xf32>
    %84 = arith.divf %82, %83 : vector<4x32xf32>
    %85 = arith.mulf %76, %59 : vector<4x32xf32>
    %86 = arith.mulf %70, %78 : vector<4x32xf32>
    %87 = arith.addf %85, %86 : vector<4x32xf32>
    %88 = math.tanh %87 : vector<4x32xf32>
    %89 = arith.mulf %84, %88 : vector<4x32xf32>
    %c0_30 = arith.constant 0 : index
    %c0_31 = arith.constant 0 : index
    %90 = vector.load %arg5[%c0_30, %c0_31] : memref<4x32xf32, #tpu.memory_space<vmem>>, vector<4x32xf32>
    tpu.vector_store %arg5[%c0_30, %c0_31], %89 {strides = array<i32>} : memref<4x32xf32, #tpu.memory_space<vmem>>, vector<4x32xf32>,
    %c0_32 = arith.constant 0 : index
    %c0_33 = arith.constant 0 : index
    %91 = vector.load %arg6[%c0_32, %c0_33] : memref<4x32xf32, #tpu.memory_space<vmem>>, vector<4x32xf32>
    tpu.vector_store %arg6[%c0_32, %c0_33], %87 {strides = array<i32>} : memref<4x32xf32, #tpu.memory_space<vmem>>, vector<4x32xf32>,
    %92 = vector.extract_strided_slice %89 {offsets = [0, 0], sizes = [2, 32], strides = [1, 1]} : vector<4x32xf32> to vector<2x32xf32>
    %93 = arith.index_cast %c1_i32 : i32 to index
    %c0_34 = arith.constant 0 : index
    %c0_35 = arith.constant 0 : index
    %94 = vector.load %arg3[%93, %c0_34, %c0_35] : memref<4x2x32xf32, #tpu.memory_space<vmem>>, vector<1x2x32xf32>
    %95 = vector.shape_cast %94 : vector<1x2x32xf32> to vector<2x32xf32>
    %96 = vector.shape_cast %92 : vector<2x32xf32> to vector<1x2x32xf32>
    tpu.vector_store %arg3[%93, %c0_34, %c0_35], %96 {strides = array<i32>} : memref<4x2x32xf32, #tpu.memory_space<vmem>>, vector<1x2x32xf32>,
    %97 = vector.extract_strided_slice %89 {offsets = [2, 0], sizes = [2, 32], strides = [1, 1]} : vector<4x32xf32> to vector<2x32xf32>
    %c3_i32_36 = arith.constant 3 : i32
    %98 = arith.subi %c3_i32_36, %c1_i32 : i32
    %99 = arith.index_cast %98 : i32 to index
    %c0_37 = arith.constant 0 : index
    %c0_38 = arith.constant 0 : index
    %100 = vector.load %arg4[%99, %c0_37, %c0_38] : memref<4x2x32xf32, #tpu.memory_space<vmem>>, vector<1x2x32xf32>
    %101 = vector.shape_cast %100 : vector<1x2x32xf32> to vector<2x32xf32>
    %102 = vector.shape_cast %97 : vector<2x32xf32> to vector<1x2x32xf32>
    tpu.vector_store %arg4[%99, %c0_37, %c0_38], %102 {strides = array<i32>} : memref<4x2x32xf32, #tpu.memory_space<vmem>>, vector<1x2x32xf32>,
    %c2_i32_39 = arith.constant 2 : i32
    %103 = arith.index_cast %c2_i32_39 : i32 to index
    %c0_40 = arith.constant 0 : index
    %c0_41 = arith.constant 0 : index
    %104 = vector.load %arg1[%103, %c0_40, %c0_41] : memref<4x4x128xf32, #tpu.memory_space<vmem>>, vector<1x4x128xf32>
    %105 = vector.shape_cast %104 : vector<1x4x128xf32> to vector<4x128xf32>
    %c0_42 = arith.constant 0 : index
    %c0_43 = arith.constant 0 : index
    %106 = vector.load %arg5[%c0_42, %c0_43] : memref<4x32xf32, #tpu.memory_space<vmem>>, vector<4x32xf32>
    %c0_44 = arith.constant 0 : index
    %c0_45 = arith.constant 0 : index
    %107 = vector.load %arg6[%c0_44, %c0_45] : memref<4x32xf32, #tpu.memory_space<vmem>>, vector<4x32xf32>
    %cst_46 = arith.constant dense<0.000000e+00> : vector<4x256xf32>
    %108 = tpu.matmul %106, %3, %cst_46 {dimension_numbers = #tpu.dot_dimension_numbers<[1], [0], [0], [1], [0, 0, 1, 1], [], []>} : vector<4x32xf32>, vector<32x256xf32>, vector<4x256xf32> -> vector<4x256xf32>
    %109 = vector.extract_strided_slice %108 {offsets = [0, 0], sizes = [4, 128], strides = [1, 1]} : vector<4x256xf32> to vector<4x128xf32>
    %110 = vector.extract_strided_slice %108 {offsets = [0, 128], sizes = [4, 128], strides = [1, 1]} : vector<4x256xf32> to vector<4x128xf32>
    %111 = arith.select %6, %109, %110 : vector<4x128xi1>, vector<4x128xf32>
    %112 = arith.addf %105, %111 : vector<4x128xf32>
    %113 = vector.extract_strided_slice %112 {offsets = [0, 0], sizes = [4, 32], strides = [1, 1]} : vector<4x128xf32> to vector<4x32xf32>
    %114 = arith.negf %113 : vector<4x32xf32>
    %115 = math.exp %114 : vector<4x32xf32>
    %cst_47 = arith.constant 1.000000e+00 : f32
    %116 = vector.broadcast %cst_47 : f32 to vector<4x32xf32>
    %117 = arith.addf %116, %115 : vector<4x32xf32>
    %118 = arith.divf %116, %117 : vector<4x32xf32>
    %119 = vector.extract_strided_slice %112 {offsets = [0, 32], sizes = [4, 32], strides = [1, 1]} : vector<4x128xf32> to vector<4x32xf32>
    %120 = arith.negf %119 : vector<4x32xf32>
    %121 = math.exp %120 : vector<4x32xf32>
    %cst_48 = arith.constant 1.000000e+00 : f32
    %122 = vector.broadcast %cst_48 : f32 to vector<4x32xf32>
    %123 = arith.addf %122, %121 : vector<4x32xf32>
    %124 = arith.divf %122, %123 : vector<4x32xf32>
    %125 = vector.extract_strided_slice %112 {offsets = [0, 64], sizes = [4, 32], strides = [1, 1]} : vector<4x128xf32> to vector<4x32xf32>
    %126 = math.tanh %125 : vector<4x32xf32>
    %127 = vector.extract_strided_slice %112 {offsets = [0, 96], sizes = [4, 32], strides = [1, 1]} : vector<4x128xf32> to vector<4x32xf32>
    %128 = arith.negf %127 : vector<4x32xf32>
    %129 = math.exp %128 : vector<4x32xf32>
    %cst_49 = arith.constant 1.000000e+00 : f32
    %130 = vector.broadcast %cst_49 : f32 to vector<4x32xf32>
    %131 = arith.addf %130, %129 : vector<4x32xf32>
    %132 = arith.divf %130, %131 : vector<4x32xf32>
    %133 = arith.mulf %124, %107 : vector<4x32xf32>
    %134 = arith.mulf %118, %126 : vector<4x32xf32>
    %135 = arith.addf %133, %134 : vector<4x32xf32>
    %136 = math.tanh %135 : vector<4x32xf32>
    %137 = arith.mulf %132, %136 : vector<4x32xf32>
    %c0_50 = arith.constant 0 : index
    %c0_51 = arith.constant 0 : index
    %138 = vector.load %arg5[%c0_50, %c0_51] : memref<4x32xf32, #tpu.memory_space<vmem>>, vector<4x32xf32>
    tpu.vector_store %arg5[%c0_50, %c0_51], %137 {strides = array<i32>} : memref<4x32xf32, #tpu.memory_space<vmem>>, vector<4x32xf32>,
    %c0_52 = arith.constant 0 : index
    %c0_53 = arith.constant 0 : index
    %139 = vector.load %arg6[%c0_52, %c0_53] : memref<4x32xf32, #tpu.memory_space<vmem>>, vector<4x32xf32>
    tpu.vector_store %arg6[%c0_52, %c0_53], %135 {strides = array<i32>} : memref<4x32xf32, #tpu.memory_space<vmem>>, vector<4x32xf32>,
    %140 = vector.extract_strided_slice %137 {offsets = [0, 0], sizes = [2, 32], strides = [1, 1]} : vector<4x32xf32> to vector<2x32xf32>
    %141 = arith.index_cast %c2_i32_39 : i32 to index
    %c0_54 = arith.constant 0 : index
    %c0_55 = arith.constant 0 : index
    %142 = vector.load %arg3[%141, %c0_54, %c0_55] : memref<4x2x32xf32, #tpu.memory_space<vmem>>, vector<1x2x32xf32>
    %143 = vector.shape_cast %142 : vector<1x2x32xf32> to vector<2x32xf32>
    %144 = vector.shape_cast %140 : vector<2x32xf32> to vector<1x2x32xf32>
    tpu.vector_store %arg3[%141, %c0_54, %c0_55], %144 {strides = array<i32>} : memref<4x2x32xf32, #tpu.memory_space<vmem>>, vector<1x2x32xf32>,
    %145 = vector.extract_strided_slice %137 {offsets = [2, 0], sizes = [2, 32], strides = [1, 1]} : vector<4x32xf32> to vector<2x32xf32>
    %c3_i32_56 = arith.constant 3 : i32
    %146 = arith.subi %c3_i32_56, %c2_i32_39 : i32
    %147 = arith.index_cast %146 : i32 to index
    %c0_57 = arith.constant 0 : index
    %c0_58 = arith.constant 0 : index
    %148 = vector.load %arg4[%147, %c0_57, %c0_58] : memref<4x2x32xf32, #tpu.memory_space<vmem>>, vector<1x2x32xf32>
    %149 = vector.shape_cast %148 : vector<1x2x32xf32> to vector<2x32xf32>
    %150 = vector.shape_cast %145 : vector<2x32xf32> to vector<1x2x32xf32>
    tpu.vector_store %arg4[%147, %c0_57, %c0_58], %150 {strides = array<i32>} : memref<4x2x32xf32, #tpu.memory_space<vmem>>, vector<1x2x32xf32>,
    %c3_i32_59 = arith.constant 3 : i32
    %151 = arith.index_cast %c3_i32_59 : i32 to index
    %c0_60 = arith.constant 0 : index
    %c0_61 = arith.constant 0 : index
    %152 = vector.load %arg1[%151, %c0_60, %c0_61] : memref<4x4x128xf32, #tpu.memory_space<vmem>>, vector<1x4x128xf32>
    %153 = vector.shape_cast %152 : vector<1x4x128xf32> to vector<4x128xf32>
    %c0_62 = arith.constant 0 : index
    %c0_63 = arith.constant 0 : index
    %154 = vector.load %arg5[%c0_62, %c0_63] : memref<4x32xf32, #tpu.memory_space<vmem>>, vector<4x32xf32>
    %c0_64 = arith.constant 0 : index
    %c0_65 = arith.constant 0 : index
    %155 = vector.load %arg6[%c0_64, %c0_65] : memref<4x32xf32, #tpu.memory_space<vmem>>, vector<4x32xf32>
    %cst_66 = arith.constant dense<0.000000e+00> : vector<4x256xf32>
    %156 = tpu.matmul %154, %3, %cst_66 {dimension_numbers = #tpu.dot_dimension_numbers<[1], [0], [0], [1], [0, 0, 1, 1], [], []>} : vector<4x32xf32>, vector<32x256xf32>, vector<4x256xf32> -> vector<4x256xf32>
    %157 = vector.extract_strided_slice %156 {offsets = [0, 0], sizes = [4, 128], strides = [1, 1]} : vector<4x256xf32> to vector<4x128xf32>
    %158 = vector.extract_strided_slice %156 {offsets = [0, 128], sizes = [4, 128], strides = [1, 1]} : vector<4x256xf32> to vector<4x128xf32>
    %159 = arith.select %6, %157, %158 : vector<4x128xi1>, vector<4x128xf32>
    %160 = arith.addf %153, %159 : vector<4x128xf32>
    %161 = vector.extract_strided_slice %160 {offsets = [0, 0], sizes = [4, 32], strides = [1, 1]} : vector<4x128xf32> to vector<4x32xf32>
    %162 = arith.negf %161 : vector<4x32xf32>
    %163 = math.exp %162 : vector<4x32xf32>
    %cst_67 = arith.constant 1.000000e+00 : f32
    %164 = vector.broadcast %cst_67 : f32 to vector<4x32xf32>
    %165 = arith.addf %164, %163 : vector<4x32xf32>
    %166 = arith.divf %164, %165 : vector<4x32xf32>
    %167 = vector.extract_strided_slice %160 {offsets = [0, 32], sizes = [4, 32], strides = [1, 1]} : vector<4x128xf32> to vector<4x32xf32>
    %168 = arith.negf %167 : vector<4x32xf32>
    %169 = math.exp %168 : vector<4x32xf32>
    %cst_68 = arith.constant 1.000000e+00 : f32
    %170 = vector.broadcast %cst_68 : f32 to vector<4x32xf32>
    %171 = arith.addf %170, %169 : vector<4x32xf32>
    %172 = arith.divf %170, %171 : vector<4x32xf32>
    %173 = vector.extract_strided_slice %160 {offsets = [0, 64], sizes = [4, 32], strides = [1, 1]} : vector<4x128xf32> to vector<4x32xf32>
    %174 = math.tanh %173 : vector<4x32xf32>
    %175 = vector.extract_strided_slice %160 {offsets = [0, 96], sizes = [4, 32], strides = [1, 1]} : vector<4x128xf32> to vector<4x32xf32>
    %176 = arith.negf %175 : vector<4x32xf32>
    %177 = math.exp %176 : vector<4x32xf32>
    %cst_69 = arith.constant 1.000000e+00 : f32
    %178 = vector.broadcast %cst_69 : f32 to vector<4x32xf32>
    %179 = arith.addf %178, %177 : vector<4x32xf32>
    %180 = arith.divf %178, %179 : vector<4x32xf32>
    %181 = arith.mulf %172, %155 : vector<4x32xf32>
    %182 = arith.mulf %166, %174 : vector<4x32xf32>
    %183 = arith.addf %181, %182 : vector<4x32xf32>
    %184 = math.tanh %183 : vector<4x32xf32>
    %185 = arith.mulf %180, %184 : vector<4x32xf32>
    %c0_70 = arith.constant 0 : index
    %c0_71 = arith.constant 0 : index
    %186 = vector.load %arg5[%c0_70, %c0_71] : memref<4x32xf32, #tpu.memory_space<vmem>>, vector<4x32xf32>
    tpu.vector_store %arg5[%c0_70, %c0_71], %185 {strides = array<i32>} : memref<4x32xf32, #tpu.memory_space<vmem>>, vector<4x32xf32>,
    %c0_72 = arith.constant 0 : index
    %c0_73 = arith.constant 0 : index
    %187 = vector.load %arg6[%c0_72, %c0_73] : memref<4x32xf32, #tpu.memory_space<vmem>>, vector<4x32xf32>
    tpu.vector_store %arg6[%c0_72, %c0_73], %183 {strides = array<i32>} : memref<4x32xf32, #tpu.memory_space<vmem>>, vector<4x32xf32>,
    %188 = vector.extract_strided_slice %185 {offsets = [0, 0], sizes = [2, 32], strides = [1, 1]} : vector<4x32xf32> to vector<2x32xf32>
    %189 = arith.index_cast %c3_i32_59 : i32 to index
    %c0_74 = arith.constant 0 : index
    %c0_75 = arith.constant 0 : index
    %190 = vector.load %arg3[%189, %c0_74, %c0_75] : memref<4x2x32xf32, #tpu.memory_space<vmem>>, vector<1x2x32xf32>
    %191 = vector.shape_cast %190 : vector<1x2x32xf32> to vector<2x32xf32>
    %192 = vector.shape_cast %188 : vector<2x32xf32> to vector<1x2x32xf32>
    tpu.vector_store %arg3[%189, %c0_74, %c0_75], %192 {strides = array<i32>} : memref<4x2x32xf32, #tpu.memory_space<vmem>>, vector<1x2x32xf32>,
    %193 = vector.extract_strided_slice %185 {offsets = [2, 0], sizes = [2, 32], strides = [1, 1]} : vector<4x32xf32> to vector<2x32xf32>
    %c3_i32_76 = arith.constant 3 : i32
    %194 = arith.subi %c3_i32_76, %c3_i32_59 : i32
    %195 = arith.index_cast %194 : i32 to index
    %c0_77 = arith.constant 0 : index
    %c0_78 = arith.constant 0 : index
    %196 = vector.load %arg4[%195, %c0_77, %c0_78] : memref<4x2x32xf32, #tpu.memory_space<vmem>>, vector<1x2x32xf32>
    %197 = vector.shape_cast %196 : vector<1x2x32xf32> to vector<2x32xf32>
    %198 = vector.shape_cast %193 : vector<2x32xf32> to vector<1x2x32xf32>
    tpu.vector_store %arg4[%195, %c0_77, %c0_78], %198 {strides = array<i32>} : memref<4x2x32xf32, #tpu.memory_space<vmem>>, vector<1x2x32xf32>,
    %c4_i32 = arith.constant 4 : i32
    return
  }
  func.func @transform_0(%arg0: i32) -> (i32, i32, i32) {
    %c0_i32 = arith.constant 0 : i32
    %c0_i32_0 = arith.constant 0 : i32
    %c0_i32_1 = arith.constant 0 : i32
    return %arg0, %c0_i32, %c0_i32_0 : i32, i32, i32
  }
  func.func @transform_1(%arg0: i32) -> (i32, i32) {
    %c0_i32 = arith.constant 0 : i32
    %c0_i32_0 = arith.constant 0 : i32
    %c0_i32_1 = arith.constant 0 : i32
    return %c0_i32, %c0_i32_0 : i32, i32
  }
  func.func @transform_2(%arg0: i32) -> (i32, i32, i32) {
    %c0_i32 = arith.constant 0 : i32
    %c0_i32_0 = arith.constant 0 : i32
    %c0_i32_1 = arith.constant 0 : i32
    return %arg0, %c0_i32, %c0_i32_0 : i32, i32, i32
  }
  func.func @transform_3(%arg0: i32) -> (i32, i32, i32) {
    %c1_i32 = arith.constant 1 : i32
    %0 = arith.subi %c1_i32, %arg0 : i32
    %c0_i32 = arith.constant 0 : i32
    %c0_i32_0 = arith.constant 0 : i32
    %c0_i32_1 = arith.constant 0 : i32
    return %0, %c0_i32, %c0_i32_0 : i32, i32, i32
  }
}

</mosaic_0001>

<llo_original>
// kernel: tpu_custom_call.1
$region0: #{tpu_custom_call.1}
  #allocation0 [shape = 'u32[]', space=smem, size = 0x4, offset = 0x4, fixed_abs, tag = 'smem constant byte address 0x4 - core index']
  #allocation1 [shape = 'u32[144,128]{1,0:T(1,128)}', space=vmem, size = 0x12000, scoped, tag = 'internal scratch']
  #allocation2 [shape = 'f32[4,32]{1,0:T(4,128)}', space=vmem, size = 0x800, scoped, tag = 'scratch operand']
  #allocation3 [shape = 'f32[4,32]{1,0:T(4,128)}', space=vmem, size = 0x800, scoped, tag = 'scratch operand']
  %s0 = inlined_call_operand.hbm [shape: f32[8,4,128], index: 0, kind: input, shape index: {}]
  %s1 = inlined_call_operand.hbm [shape: f32[32,256], index: 1, kind: input, shape index: {}]
  %s2 = inlined_call_operand.hbm [shape: f32[8,2,32], index: 2, kind: output, shape index: {0}]
  %s3 = inlined_call_operand.hbm [shape: f32[8,2,32], index: 3, kind: output, shape index: {1}]
  %4 = xla_tuple %s2, %s3
  %s5 = sld [smem:[#allocation0]]
  $region61: #{tpu_custom_call.1} parent=0
    _
  %s7 = ssub.s32 1, %s5
  %s8 = scalar_select 0, %s7, %s5
  $region1: #{tpu_custom_call.1} parent=0
    #allocation4 [shape = 'u8[16384]{0}', space=vmem, size = 0x4000, scoped, tag = 'input window, operand 0']
    #allocation5 [shape = 's32[2]{0}', space=sflag, size = 0x8, scoped, tag = 'scoped memory for tpu_custom_call.1']
    #allocation6 [shape = 's32[2]{0}', space=sflag, size = 0x8, scoped, tag = 'scoped memory for tpu_custom_call.1']
    #allocation7 [shape = 'u8[32768]{0}', space=vmem, size = 0x8000, scoped, tag = 'input window, operand 1, single buffered']
    #allocation8 [shape = 's32[1]{0}', space=sflag, size = 0x4, scoped, tag = 'scoped memory for tpu_custom_call.1']
    #allocation9 [shape = 'u8[8192]{0}', space=vmem, size = 0x2000, scoped, tag = 'output window, operand 0']
    #allocation10 [shape = 'u8[8192]{0}', space=vmem, size = 0x2000, scoped, tag = 'output window, operand 1']
    #allocation11 [shape = 's32[2]{0}', space=sflag, size = 0x8, scoped, tag = 'scoped memory for tpu_custom_call.1']
    %9 = vsyncpa [#allocation5], 0
    %s10 = scalar_lea.sflag [#allocation5], 1
    %11 = vsyncpa %s10, 0
    %12 = vsyncpa [#allocation8], 0
    %13 = vsyncpa [#allocation6], 0
    %s14 = scalar_lea.sflag [#allocation6], 1
    %15 = vsyncpa %s14, 0
    %16 = vsyncpa [#allocation11], 0
    %s17 = scalar_lea.sflag [#allocation11], 1
    %18 = vsyncpa %s17, 0
    loop: start=0, step=1, limit=4
    $region2: #{tpu_custom_call.1} parent=1 // loop_pre_header
      _
    $region3: #{tpu_custom_call.1} parent=1 // loop_header
      %s20 = sphi 0, %s24
      %p21 = scmp.ge.s32.totalorder %s20, 4
      %s30 = sphi 0, %s32
      %s33 = sphi 0, %s30
      %s34 = sphi 0, %s33
      %s50 = sphi 0, %s34
      %s54 = sphi 0, %s54
      %s56 = sphi 0, %s54
      %s57 = sphi 0, %s56
      %s71 = sphi 0, %s57
      %s77 = sphi 0, %s79
      %s80 = sphi 0, %s77
      %s81 = sphi 0, %s80
      %s97 = sphi 0, %s81
      %s105 = sphi 0, %s107
      %s108 = sphi 0, %s105
      %s109 = sphi 0, %s108
      %s125 = sphi 0, %s109
    $region4: #{tpu_custom_call.1} parent=1 // loop_header_branch
      %23 = sbr.rel (%p21) target = $region8
    $region5: #{tpu_custom_call.1} parent=1 // loop_body
      %s25 = ssub.s32 %s20, 1
      %s26 = ssub.s32 %s20, 2
      %s27 = sadd.s32 %s20, 1
      %s28 = ssub.s32 %s20, %s27
      %p29 = scmp.eq.s32.totalorder %s28, 0
      %s31 = sadd.s32 %s30, 1
      %s32 = scalar_select %p29, %s30, %s31
      %p35 = pneg %p29
      %p36 = scmp.eq.s32.totalorder %s20, 1
      %p37 = por %p35, %p36
      %p38 = scmp.ne.s32.totalorder %s30, %s33
      %p39 = scmp.eq.s32.totalorder %s20, 0
      %p40 = por %p38, %p39
      %p41 = scmp.ne.s32.totalorder %s30, %s33
      %p42 = scmp.eq.s32.totalorder %s25, 1
      %p43 = por %p41, %p42
      %p44 = scmp.ne.s32.totalorder %s33, %s34
      %p45 = scmp.eq.s32.totalorder %s25, 0
      %p46 = por %p44, %p45
      %p47 = scmp.ne.s32.totalorder %s33, %s34
      %p48 = scmp.eq.s32.totalorder %s26, 1
      %p49 = por %p47, %p48
      %p51 = scmp.ne.s32.totalorder %s34, %s50
      %p52 = scmp.eq.s32.totalorder %s26, 0
      %p53 = por %p51, %p52
      %s55 = sadd.s32 %s54, 1
      %p58 = scmp.eq.s32.totalorder %s20, 1
      %p59 = scmp.ne.s32.totalorder %s54, %s56
      %p60 = scmp.eq.s32.totalorder %s20, 0
      %p61 = por %p59, %p60
      %p62 = scmp.ne.s32.totalorder %s54, %s56
      %p63 = scmp.eq.s32.totalorder %s25, 1
      %p64 = por %p62, %p63
      %p65 = scmp.ne.s32.totalorder %s56, %s57
      %p66 = scmp.eq.s32.totalorder %s25, 0
      %p67 = por %p65, %p66
      %p68 = scmp.ne.s32.totalorder %s56, %s57
      %p69 = scmp.eq.s32.totalorder %s26, 1
      %p70 = por %p68, %p69
      %p72 = scmp.ne.s32.totalorder %s57, %s71
      %p73 = scmp.eq.s32.totalorder %s26, 0
      %p74 = por %p72, %p73
      %s75 = ssub.s32 %s20, %s27
      %p76 = scmp.eq.s32.totalorder %s75, 0
      %s78 = sadd.s32 %s77, 1
      %s79 = scalar_select %p76, %s77, %s78
      %p82 = pneg %p76
      %p83 = scmp.eq.s32.totalorder %s20, 1
      %p84 = por %p82, %p83
      %p85 = scmp.ne.s32.totalorder %s77, %s80
      %p86 = scmp.eq.s32.totalorder %s20, 0
      %p87 = por %p85, %p86
      %p88 = scmp.ne.s32.totalorder %s77, %s80
      %p89 = scmp.eq.s32.totalorder %s25, 1
      %p90 = por %p88, %p89
      %p91 = scmp.ne.s32.totalorder %s80, %s81
      %p92 = scmp.eq.s32.totalorder %s25, 0
      %p93 = por %p91, %p92
      %p94 = scmp.ne.s32.totalorder %s80, %s81
      %p95 = scmp.eq.s32.totalorder %s26, 1
      %p96 = por %p94, %p95
      %p98 = scmp.ne.s32.totalorder %s81, %s97
      %p99 = scmp.eq.s32.totalorder %s26, 0
      %p100 = por %p98, %p99
      %s101 = ssub.s32 1, %s20
      %s102 = ssub.s32 1, %s27
      %s103 = ssub.s32 %s101, %s102
      %p104 = scmp.eq.s32.totalorder %s103, 0
      %s106 = sadd.s32 %s105, 1
      %s107 = scalar_select %p104, %s105, %s106
      %p110 = pneg %p104
      %p111 = scmp.eq.s32.totalorder %s20, 1
      %p112 = por %p110, %p111
      %p113 = scmp.ne.s32.totalorder %s105, %s108
      %p114 = scmp.eq.s32.totalorder %s20, 0
      %p115 = por %p113, %p114
      %p116 = scmp.ne.s32.totalorder %s105, %s108
      %p117 = scmp.eq.s32.totalorder %s25, 1
      %p118 = por %p116, %p117
      %p119 = scmp.ne.s32.totalorder %s108, %s109
      %p120 = scmp.eq.s32.totalorder %s25, 0
      %p121 = por %p119, %p120
      %p122 = scmp.ne.s32.totalorder %s108, %s109
      %p123 = scmp.eq.s32.totalorder %s26, 1
      %p124 = por %p122, %p123
      %p126 = scmp.ne.s32.totalorder %s109, %s125
      %p127 = scmp.eq.s32.totalorder %s26, 0
      %p128 = por %p126, %p127
      %p129 = scmp.le.s32.totalorder 1, %s20
      %p130 = scmp.lt.s32.totalorder %s20, 3
      %p131 = pnand %p129, %p130
      %p132 = pneg %p131
      // Predicated region
      $region9: #{tpu_custom_call.1} parent=5 // pred_check
        _
      $region10: #{tpu_custom_call.1} parent=5 // pred_check_branch
        %134 = sbr.rel (%p131) target = $region12
      $region11: #{tpu_custom_call.1} parent=5 // pred_region
        %s135 = ssub.s32 %s20, 1
        // Predicated region
        $region13: #{tpu_custom_call.1} parent=11 // pred_check
          %p136 = pneg %p67
        $region14: #{tpu_custom_call.1} parent=11 // pred_check_branch
          %138 = sbr.rel (%p136) target = $region16
        $region15: #{tpu_custom_call.1} parent=11 // pred_region
          %s140 = ssub.s32 1024, 1024
          %141 = vsyncadd [#allocation8], %s140
          %s142 = sshll.u32 [#allocation7], 4
          %s143 = int_to_ptr.vmem [resolvable:$true] %s142
          %148 = dma.hbm_to_vmem [thread:$0]  %s1, 1024, %s143, [#allocation8], 256, 256, 16
        $region16: #{tpu_custom_call.1} parent=11 // pred_fallthru
          _
      $region12: #{tpu_custom_call.1} parent=5 // pred_fallthru
        _
      %p149 = scmp.lt.s32.totalorder %s20, 2
      // Predicated region
      $region17: #{tpu_custom_call.1} parent=5 // pred_check
        %p150 = pneg %p149
      $region18: #{tpu_custom_call.1} parent=5 // pred_check_branch
        %152 = sbr.rel (%p150) target = $region20
      $region19: #{tpu_custom_call.1} parent=5 // pred_region
        // Predicated region
        $region21: #{tpu_custom_call.1} parent=19 // pred_check
          %p153 = pneg %p40
        $region22: #{tpu_custom_call.1} parent=19 // pred_check_branch
          %155 = sbr.rel (%p153) target = $region24
        $region23: #{tpu_custom_call.1} parent=19 // pred_region
          %s156 = sand.u32 %s30, 1
          %s157 = scalar_lea.sflag [#allocation5], %s156
          %s158 = sand.u32 %s30, 1
          %s159 = smul.addr %s158, 16
          %s160 = scalar_lea.vmem [#allocation4], %s159
          %s161 = smul.u32 4, %s20
          %s163 = ssub.s32 256, 256
          %164 = vsyncadd %s157, %s163
          %s165 = smul.addr %s161, 64
          %s166 = scalar_lea.hbm %s0, %s165
          %s167 = sshll.u32 %s160, 4
          %s168 = int_to_ptr.vmem [resolvable:$true] %s167
          %173 = dma.hbm_to_vmem [thread:$0]  %s166, 256, %s168, %s157, 64, 64, 4
        $region24: #{tpu_custom_call.1} parent=19 // pred_fallthru
          _
      $region20: #{tpu_custom_call.1} parent=5 // pred_fallthru
        _
      %p174 = scmp.le.s32.totalorder 1, %s20
      %p175 = scmp.lt.s32.totalorder %s20, 3
      %p176 = pnand %p174, %p175
      %p177 = pneg %p176
      // Predicated region
      $region25: #{tpu_custom_call.1} parent=5 // pred_check
        _
      $region26: #{tpu_custom_call.1} parent=5 // pred_check_branch
        %179 = sbr.rel (%p176) target = $region28
      $region27: #{tpu_custom_call.1} parent=5 // pred_region
        %s180 = ssub.s32 %s20, 1
        %s181 = sand.u32 %s33, 1
        %s182 = scalar_lea.sflag [#allocation5], %s181
        %s183 = sand.u32 %s33, 1
        %s184 = smul.addr %s183, 16
        %s185 = scalar_lea.vmem [#allocation4], %s184
        // Predicated region
        $region29: #{tpu_custom_call.1} parent=27 // pred_check
          %p186 = pneg %p46
        $region30: #{tpu_custom_call.1} parent=27 // pred_check_branch
          %188 = sbr.rel (%p186) target = $region32
        $region31: #{tpu_custom_call.1} parent=27 // pred_region
          %189 = dma.done %s182, 256
        $region32: #{tpu_custom_call.1} parent=27 // pred_fallthru
          _
        // Predicated region
        $region33: #{tpu_custom_call.1} parent=27 // pred_check
          %p190 = pneg %p67
        $region34: #{tpu_custom_call.1} parent=27 // pred_check_branch
          %192 = sbr.rel (%p190) target = $region36
        $region35: #{tpu_custom_call.1} parent=27 // pred_region
          %193 = dma.done [#allocation8], 1024
        $region36: #{tpu_custom_call.1} parent=27 // pred_fallthru
          _
        %s194 = sand.u32 %s33, 1
        %s195 = scalar_lea.sflag [#allocation5], %s194
        %s196 = sand.u32 %s33, 1
        %s197 = smul.addr %s196, 16
        %s198 = scalar_lea.vmem [#allocation4], %s197
        %p199 = pneg %p46
        %p200 = pneg %p43
        %p201 = pneg %p67
        %p202 = pneg %p64
        %p203 = pneg %p93
        %p204 = pneg %p90
        %s205 = sand.u32 %s80, 1
        %s206 = scalar_lea.sflag [#allocation6], %s205
        %s207 = sand.u32 %s80, 1
        %s208 = smul.addr %s207, 8
        %s209 = scalar_lea.vmem [#allocation9], %s208
        %p210 = pneg %p121
        %p211 = pneg %p118
        %s212 = sand.u32 %s108, 1
        %s213 = scalar_lea.sflag [#allocation11], %s212
        %s214 = sand.u32 %s108, 1
        %s215 = smul.addr %s214, 8
        %s216 = scalar_lea.vmem [#allocation10], %s215
        %s217 = smul.u32 4, %s25
        %s218 = smul.u32 4, %s25
        %s219 = ssub.s32 1, %s25
        %s220 = smul.u32 4, %s219
        %p221 = scmp.eq.s32.totalorder %s25, 0
        // Predicated region
        $region37: #{tpu_custom_call.1} parent=27 // pred_check
          %p222 = pneg %p221
        $region38: #{tpu_custom_call.1} parent=27 // pred_check_branch
          %224 = sbr.rel (%p222) target = $region40
        $region39: #{tpu_custom_call.1} parent=27 // pred_region
          %vm225 = vcmask 257024
          %226 = vst.msk [vmem:[#allocation2] sm:$0xf] %vm225, 0.0
          %227 = vst.msk [vmem:[#allocation3] sm:$0xf] %vm225, 0.0
        $region40: #{tpu_custom_call.1} parent=27 // pred_fallthru
          _
        %v228 = vld [vmem:[#allocation7] sm:$0xff]
        %v229 = vld [vmem:[#allocation7 + $0x8] sm:$0xff]
        %v230 = vld [vmem:[#allocation7 + $0x10] sm:$0xff]
        %v231 = vld [vmem:[#allocation7 + $0x18] sm:$0xff]
        %v232 = vld [vmem:[#allocation7 + $0x20] sm:$0xff]
        %v233 = vld [vmem:[#allocation7 + $0x28] sm:$0xff]
        %v234 = vld [vmem:[#allocation7 + $0x30] sm:$0xff]
        %v235 = vld [vmem:[#allocation7 + $0x38] sm:$0xff]
        %v236 = vlaneseq
        %v237 = vshrl.u32 %v236, 7
        %vm238 = vcmp.lt.s32.totalorder %v237, 2
        %v239 = vld [vmem:[%s185] sm:$0xf]
        %v240 = vld [vmem:[#allocation2] sm:$0xf]
        %v241 = vld [vmem:[#allocation3] sm:$0xf]
        %vm242 = vcmask 261120
        %v244 = vsel %vm242, %v240, 0
        %246 = vmatprep.subr.mxu0 0.0
        %247 = vmatpush1.msra.mxu0 0.0
        %248 = vmatprep.subr.mxu0 0.0
        %249 = vmatpush1.msra.mxu0 0.0
        %250 = vmatprep.subr.mxu0 0.0
        %251 = vmatpush1.msra.mxu0 0.0
        %252 = vmatprep.subr.mxu0 0.0
        %253 = vmatpush1.msra.mxu0 0.0
        %254 = vmatprep.subr.mxu0 0.0
        %255 = vmatpush1.msra.mxu0 0.0
        %256 = vmatprep.subr.mxu0 0.0
        %257 = vmatpush1.msra.mxu0 0.0
        %258 = vmatprep.subr.mxu0 0.0
        %259 = vmatpush1.msra.mxu0 0.0
        %260 = vmatprep.subr.mxu0 0.0
        %261 = vmatpush1.msra.mxu0 0.0
        %262 = vmatprep.subr.mxu0 0.0
        %263 = vmatpush1.msra.mxu0 0.0
        %264 = vmatprep.subr.mxu0 0.0
        %265 = vmatpush1.msra.mxu0 0.0
        %266 = vmatprep.subr.mxu0 0.0
        %267 = vmatpush1.msra.mxu0 0.0
        %268 = vmatprep.subr.mxu0 0.0
        %269 = vmatpush1.msra.mxu0 0.0
        %270 = vmatprep.subr.mxu0 %v235
        %271 = vmatpush1.msra.mxu0 %v234
        %272 = vmatprep.subr.mxu0 %v233
        %273 = vmatpush1.msra.mxu0 %v232
        %274 = vmatprep.subr.mxu0 %v231
        %275 = vmatpush1.msra.mxu0 %v230
        %276 = vmatprep.subr.mxu0 %v229
        %277 = vmatpush1.msra.mxu0 %v228
        %278 = vmatprep.subr.mxu0 0.0
        %279 = vmatpush2.msra.mxu0 0.0
        %280 = vmatprep.subr.mxu0 0.0
        %281 = vmatpush2.msra.mxu0 0.0
        %282 = vmatprep.subr.mxu0 0.0
        %283 = vmatpush2.msra.mxu0 0.0
        %284 = vmatprep.subr.mxu0 0.0
        %285 = vmatpush2.msra.mxu0 0.0
        %286 = vmatprep.subr.mxu0 0.0
        %287 = vmatpush2.msra.mxu0 0.0
        %288 = vmatprep.subr.mxu0 0.0
        %289 = vmatpush2.msra.mxu0 0.0
        %290 = vmatprep.subr.mxu0 0.0
        %291 = vmatpush2.msra.mxu0 0.0
        %292 = vmatprep.subr.mxu0 0.0
        %293 = vmatpush2.msra.mxu0 0.0
        %294 = vmatprep.subr.mxu0 0.0
        %295 = vmatpush2.msra.mxu0 0.0
        %296 = vmatprep.subr.mxu0 0.0
        %297 = vmatpush2.msra.mxu0 0.0
        %298 = vmatprep.subr.mxu0 0.0
        %299 = vmatpush2.msra.mxu0 0.0
        %300 = vmatprep.subr.mxu0 0.0
        %301 = vmatpush2.msra.mxu0 0.0
        %302 = vmatprep.subr.mxu0 0.0
        %303 = vmatpush2.msra.mxu0 0.0
        %304 = vmatprep.subr.mxu0 0.0
        %305 = vmatpush2.msra.mxu0 0.0
        %306 = vmatprep.subr.mxu0 0.0
        %307 = vmatpush2.msra.mxu0 0.0
        %308 = vmatprep.subr.mxu0 0.0
        %309 = vmatpush2.msra.mxu0 0.0
        %310 = vmatprep.mubr.f32.mxu0 0.0
        %311 = vmatmul.mubr.f32.gmra.mxu0 %v244
        %v312 = vpop.f32.mrf.mxu0
        %v313 = vadd.f32 0.0, %v312
        %v314 = vpop.f32.mrf.mxu0
        %v315 = vadd.f32 0.0, %v314
        %316 = vdwg.mxu0
        %v317 = vsel %vm238, %v313, %v315
        %v318 = vadd.f32 %v239, %v317
        %v319 = vxor.u32 %v318, 2147483648
        %v320 = vmul.f32 %v319, 1.442695
        %v321 = vpow.pop %v320
        %v322 = vadd.f32 %v321, 1.0
        %v323 = vrcp.pop %v322
        %v324 = vmul.f32 1.0, %v323
        %v325 = vtanh.pop %v318
        %327 = vrot.lane.b32.xlu0 %v241, 32
        %v328 = vpop.permute.xlu0 %327
        %v330 = vmul.f32 %v324, %v328
        %332 = vrot.lane.b32.xlu0 %v325, 64
        %v333 = vpop.permute.xlu0 %332
        %v335 = vmul.f32 %v324, %v333
        %337 = vrot.lane.b32.xlu0 %v335, 32
        %v338 = vpop.permute.xlu0 %337
        %v340 = vadd.f32 %v330, %v338
        %v341 = vtanh.pop %v340
        %343 = vrot.lane.b32.xlu0 %v341, 64
        %v344 = vpop.permute.xlu0 %343
        %v346 = vmul.f32 %v324, %v344
        %348 = vrot.lane.b32.xlu0 %v346, 32
        %v349 = vpop.permute.xlu0 %348
        %vm351 = vcmask 257024
        %352 = vst.msk [vmem:[#allocation2] sm:$0xf] %vm351, %v349
        %354 = vrot.lane.b32.xlu0 %v340, 96
        %v355 = vpop.permute.xlu0 %354
        %357 = vst.msk [vmem:[#allocation3] sm:$0xf] %vm351, %v355
        %vm358 = vcmask 254976
        %359 = vst.msk [vmem:[%s209] sm:$0x3] %vm358, %v349
        %s360 = scalar_lea.vmem %s216, 6 [#allocation10]
        %vm361 = vcmask 257026
        %362 = vst.msk [vmem:[%s360 - $0x2] sm:$0xc] %vm361, %v349
        %s363 = scalar_lea.vmem %s185, 4 [#allocation4]
        %v364 = vld [vmem:[%s363] sm:$0xf]
        %v365 = vld [vmem:[#allocation2] sm:$0xf]
        %v366 = vld [vmem:[#allocation3] sm:$0xf]
        %v368 = vsel %vm242, %v365, 0
        %370 = vmatprep.subr.mxu0 0.0
        %371 = vmatpush1.msra.mxu0 0.0
        %372 = vmatprep.subr.mxu0 0.0
        %373 = vmatpush1.msra.mxu0 0.0
        %374 = vmatprep.subr.mxu0 0.0
        %375 = vmatpush1.msra.mxu0 0.0
        %376 = vmatprep.subr.mxu0 0.0
        %377 = vmatpush1.msra.mxu0 0.0
        %378 = vmatprep.subr.mxu0 0.0
        %379 = vmatpush1.msra.mxu0 0.0
        %380 = vmatprep.subr.mxu0 0.0
        %381 = vmatpush1.msra.mxu0 0.0
        %382 = vmatprep.subr.mxu0 0.0
        %383 = vmatpush1.msra.mxu0 0.0
        %384 = vmatprep.subr.mxu0 0.0
        %385 = vmatpush1.msra.mxu0 0.0
        %386 = vmatprep.subr.mxu0 0.0
        %387 = vmatpush1.msra.mxu0 0.0
        %388 = vmatprep.subr.mxu0 0.0
        %389 = vmatpush1.msra.mxu0 0.0
        %390 = vmatprep.subr.mxu0 0.0
        %391 = vmatpush1.msra.mxu0 0.0
        %392 = vmatprep.subr.mxu0 0.0
        %393 = vmatpush1.msra.mxu0 0.0
        %394 = vmatprep.subr.mxu0 %v235
        %395 = vmatpush1.msra.mxu0 %v234
        %396 = vmatprep.subr.mxu0 %v233
        %397 = vmatpush1.msra.mxu0 %v232
        %398 = vmatprep.subr.mxu0 %v231
        %399 = vmatpush1.msra.mxu0 %v230
        %400 = vmatprep.subr.mxu0 %v229
        %401 = vmatpush1.msra.mxu0 %v228
        %402 = vmatprep.subr.mxu0 0.0
        %403 = vmatpush2.msra.mxu0 0.0
        %404 = vmatprep.subr.mxu0 0.0
        %405 = vmatpush2.msra.mxu0 0.0
        %406 = vmatprep.subr.mxu0 0.0
        %407 = vmatpush2.msra.mxu0 0.0
        %408 = vmatprep.subr.mxu0 0.0
        %409 = vmatpush2.msra.mxu0 0.0
        %410 = vmatprep.subr.mxu0 0.0
        %411 = vmatpush2.msra.mxu0 0.0
        %412 = vmatprep.subr.mxu0 0.0
        %413 = vmatpush2.msra.mxu0 0.0
        %414 = vmatprep.subr.mxu0 0.0
        %415 = vmatpush2.msra.mxu0 0.0
        %416 = vmatprep.subr.mxu0 0.0
        %417 = vmatpush2.msra.mxu0 0.0
        %418 = vmatprep.subr.mxu0 0.0
        %419 = vmatpush2.msra.mxu0 0.0
        %420 = vmatprep.subr.mxu0 0.0
        %421 = vmatpush2.msra.mxu0 0.0
        %422 = vmatprep.subr.mxu0 0.0
        %423 = vmatpush2.msra.mxu0 0.0
        %424 = vmatprep.subr.mxu0 0.0
        %425 = vmatpush2.msra.mxu0 0.0
        %426 = vmatprep.subr.mxu0 0.0
        %427 = vmatpush2.msra.mxu0 0.0
        %428 = vmatprep.subr.mxu0 0.0
        %429 = vmatpush2.msra.mxu0 0.0
        %430 = vmatprep.subr.mxu0 0.0
        %431 = vmatpush2.msra.mxu0 0.0
        %432 = vmatprep.subr.mxu0 0.0
        %433 = vmatpush2.msra.mxu0 0.0
        %434 = vmatprep.mubr.f32.mxu0 0.0
        %435 = vmatmul.mubr.f32.gmra.mxu0 %v368
        %v436 = vpop.f32.mrf.mxu0
        %v437 = vadd.f32 0.0, %v436
        %v438 = vpop.f32.mrf.mxu0
        %v439 = vadd.f32 0.0, %v438
        %440 = vdwg.mxu0
        %v441 = vsel %vm238, %v437, %v439
        %v442 = vadd.f32 %v364, %v441
        %v443 = vxor.u32 %v442, 2147483648
        %v444 = vmul.f32 %v443, 1.442695
        %v445 = vpow.pop %v444
        %v446 = vadd.f32 %v445, 1.0
        %v447 = vrcp.pop %v446
        %v448 = vmul.f32 1.0, %v447
        %v449 = vtanh.pop %v442
        %451 = vrot.lane.b32.xlu0 %v366, 32
        %v452 = vpop.permute.xlu0 %451
        %v454 = vmul.f32 %v448, %v452
        %456 = vrot.lane.b32.xlu0 %v449, 64
        %v457 = vpop.permute.xlu0 %456
        %v459 = vmul.f32 %v448, %v457
        %461 = vrot.lane.b32.xlu0 %v459, 32
        %v462 = vpop.permute.xlu0 %461
        %v464 = vadd.f32 %v454, %v462
        %v465 = vtanh.pop %v464
        %467 = vrot.lane.b32.xlu0 %v465, 64
        %v468 = vpop.permute.xlu0 %467
        %v470 = vmul.f32 %v448, %v468
        %472 = vrot.lane.b32.xlu0 %v470, 32
        %v473 = vpop.permute.xlu0 %472
        %475 = vst.msk [vmem:[#allocation2] sm:$0xf] %vm351, %v473
        %477 = vrot.lane.b32.xlu0 %v464, 96
        %v478 = vpop.permute.xlu0 %477
        %480 = vst.msk [vmem:[#allocation3] sm:$0xf] %vm351, %v478
        %s481 = scalar_lea.vmem %s209, 2 [#allocation9]
        %482 = vst.msk [vmem:[%s481] sm:$0x3] %vm358, %v473
        %s483 = scalar_lea.vmem %s216, 4 [#allocation10]
        %484 = vst.msk [vmem:[%s483 - $0x2] sm:$0xc] %vm361, %v473
        %s485 = scalar_lea.vmem %s185, 8 [#allocation4]
        %v486 = vld [vmem:[%s485] sm:$0xf]
        %v487 = vld [vmem:[#allocation2] sm:$0xf]
        %v488 = vld [vmem:[#allocation3] sm:$0xf]
        %v490 = vsel %vm242, %v487, 0
        %492 = vmatprep.subr.mxu0 0.0
        %493 = vmatpush1.msra.mxu0 0.0
        %494 = vmatprep.subr.mxu0 0.0
        %495 = vmatpush1.msra.mxu0 0.0
        %496 = vmatprep.subr.mxu0 0.0
        %497 = vmatpush1.msra.mxu0 0.0
        %498 = vmatprep.subr.mxu0 0.0
        %499 = vmatpush1.msra.mxu0 0.0
        %500 = vmatprep.subr.mxu0 0.0
        %501 = vmatpush1.msra.mxu0 0.0
        %502 = vmatprep.subr.mxu0 0.0
        %503 = vmatpush1.msra.mxu0 0.0
        %504 = vmatprep.subr.mxu0 0.0
        %505 = vmatpush1.msra.mxu0 0.0
        %506 = vmatprep.subr.mxu0 0.0
        %507 = vmatpush1.msra.mxu0 0.0
        %508 = vmatprep.subr.mxu0 0.0
        %509 = vmatpush1.msra.mxu0 0.0
        %510 = vmatprep.subr.mxu0 0.0
        %511 = vmatpush1.msra.mxu0 0.0
        %512 = vmatprep.subr.mxu0 0.0
        %513 = vmatpush1.msra.mxu0 0.0
        %514 = vmatprep.subr.mxu0 0.0
        %515 = vmatpush1.msra.mxu0 0.0
        %516 = vmatprep.subr.mxu0 %v235
        %517 = vmatpush1.msra.mxu0 %v234
        %518 = vmatprep.subr.mxu0 %v233
        %519 = vmatpush1.msra.mxu0 %v232
        %520 = vmatprep.subr.mxu0 %v231
        %521 = vmatpush1.msra.mxu0 %v230
        %522 = vmatprep.subr.mxu0 %v229
        %523 = vmatpush1.msra.mxu0 %v228
        %524 = vmatprep.subr.mxu0 0.0
        %525 = vmatpush2.msra.mxu0 0.0
        %526 = vmatprep.subr.mxu0 0.0
        %527 = vmatpush2.msra.mxu0 0.0
        %528 = vmatprep.subr.mxu0 0.0
        %529 = vmatpush2.msra.mxu0 0.0
        %530 = vmatprep.subr.mxu0 0.0
        %531 = vmatpush2.msra.mxu0 0.0
        %532 = vmatprep.subr.mxu0 0.0
        %533 = vmatpush2.msra.mxu0 0.0
        %534 = vmatprep.subr.mxu0 0.0
        %535 = vmatpush2.msra.mxu0 0.0
        %536 = vmatprep.subr.mxu0 0.0
        %537 = vmatpush2.msra.mxu0 0.0
        %538 = vmatprep.subr.mxu0 0.0
        %539 = vmatpush2.msra.mxu0 0.0
        %540 = vmatprep.subr.mxu0 0.0
        %541 = vmatpush2.msra.mxu0 0.0
        %542 = vmatprep.subr.mxu0 0.0
        %543 = vmatpush2.msra.mxu0 0.0
        %544 = vmatprep.subr.mxu0 0.0
        %545 = vmatpush2.msra.mxu0 0.0
        %546 = vmatprep.subr.mxu0 0.0
        %547 = vmatpush2.msra.mxu0 0.0
        %548 = vmatprep.subr.mxu0 0.0
        %549 = vmatpush2.msra.mxu0 0.0
        %550 = vmatprep.subr.mxu0 0.0
        %551 = vmatpush2.msra.mxu0 0.0
        %552 = vmatprep.subr.mxu0 0.0
        %553 = vmatpush2.msra.mxu0 0.0
        %554 = vmatprep.subr.mxu0 0.0
        %555 = vmatpush2.msra.mxu0 0.0
        %556 = vmatprep.mubr.f32.mxu0 0.0
        %557 = vmatmul.mubr.f32.gmra.mxu0 %v490
        %v558 = vpop.f32.mrf.mxu0
        %v559 = vadd.f32 0.0, %v558
        %v560 = vpop.f32.mrf.mxu0
        %v561 = vadd.f32 0.0, %v560
        %562 = vdwg.mxu0
        %v563 = vsel %vm238, %v559, %v561
        %v564 = vadd.f32 %v486, %v563
        %v565 = vxor.u32 %v564, 2147483648
        %v566 = vmul.f32 %v565, 1.442695
        %v567 = vpow.pop %v566
        %v568 = vadd.f32 %v567, 1.0
        %v569 = vrcp.pop %v568
        %v570 = vmul.f32 1.0, %v569
        %v571 = vtanh.pop %v564
        %573 = vrot.lane.b32.xlu0 %v488, 32
        %v574 = vpop.permute.xlu0 %573
        %v576 = vmul.f32 %v570, %v574
        %578 = vrot.lane.b32.xlu0 %v571, 64
        %v579 = vpop.permute.xlu0 %578
        %v581 = vmul.f32 %v570, %v579
        %583 = vrot.lane.b32.xlu0 %v581, 32
        %v584 = vpop.permute.xlu0 %583
        %v586 = vadd.f32 %v576, %v584
        %v587 = vtanh.pop %v586
        %589 = vrot.lane.b32.xlu0 %v587, 64
        %v590 = vpop.permute.xlu0 %589
        %v592 = vmul.f32 %v570, %v590
        %594 = vrot.lane.b32.xlu0 %v592, 32
        %v595 = vpop.permute.xlu0 %594
        %597 = vst.msk [vmem:[#allocation2] sm:$0xf] %vm351, %v595
        %599 = vrot.lane.b32.xlu0 %v586, 96
        %v600 = vpop.permute.xlu0 %599
        %602 = vst.msk [vmem:[#allocation3] sm:$0xf] %vm351, %v600
        %s603 = scalar_lea.vmem %s209, 4 [#allocation9]
        %604 = vst.msk [vmem:[%s603] sm:$0x3] %vm358, %v595
        %s605 = scalar_lea.vmem %s216, 2 [#allocation10]
        %606 = vst.msk [vmem:[%s605 - $0x2] sm:$0xc] %vm361, %v595
        %s607 = scalar_lea.vmem %s185, 12 [#allocation4]
        %v608 = vld [vmem:[%s607] sm:$0xf]
        %v609 = vld [vmem:[#allocation2] sm:$0xf]
        %v610 = vld [vmem:[#allocation3] sm:$0xf]
        %v612 = vsel %vm242, %v609, 0
        %614 = vmatprep.subr.mxu0 0.0
        %615 = vmatpush1.msra.mxu0 0.0
        %616 = vmatprep.subr.mxu0 0.0
        %617 = vmatpush1.msra.mxu0 0.0
        %618 = vmatprep.subr.mxu0 0.0
        %619 = vmatpush1.msra.mxu0 0.0
        %620 = vmatprep.subr.mxu0 0.0
        %621 = vmatpush1.msra.mxu0 0.0
        %622 = vmatprep.subr.mxu0 0.0
        %623 = vmatpush1.msra.mxu0 0.0
        %624 = vmatprep.subr.mxu0 0.0
        %625 = vmatpush1.msra.mxu0 0.0
        %626 = vmatprep.subr.mxu0 0.0
        %627 = vmatpush1.msra.mxu0 0.0
        %628 = vmatprep.subr.mxu0 0.0
        %629 = vmatpush1.msra.mxu0 0.0
        %630 = vmatprep.subr.mxu0 0.0
        %631 = vmatpush1.msra.mxu0 0.0
        %632 = vmatprep.subr.mxu0 0.0
        %633 = vmatpush1.msra.mxu0 0.0
        %634 = vmatprep.subr.mxu0 0.0
        %635 = vmatpush1.msra.mxu0 0.0
        %636 = vmatprep.subr.mxu0 0.0
        %637 = vmatpush1.msra.mxu0 0.0
        %638 = vmatprep.subr.mxu0 %v235
        %639 = vmatpush1.msra.mxu0 %v234
        %640 = vmatprep.subr.mxu0 %v233
        %641 = vmatpush1.msra.mxu0 %v232
        %642 = vmatprep.subr.mxu0 %v231
        %643 = vmatpush1.msra.mxu0 %v230
        %644 = vmatprep.subr.mxu0 %v229
        %645 = vmatpush1.msra.mxu0 %v228
        %646 = vmatprep.subr.mxu0 0.0
        %647 = vmatpush2.msra.mxu0 0.0
        %648 = vmatprep.subr.mxu0 0.0
        %649 = vmatpush2.msra.mxu0 0.0
        %650 = vmatprep.subr.mxu0 0.0
        %651 = vmatpush2.msra.mxu0 0.0
        %652 = vmatprep.subr.mxu0 0.0
        %653 = vmatpush2.msra.mxu0 0.0
        %654 = vmatprep.subr.mxu0 0.0
        %655 = vmatpush2.msra.mxu0 0.0
        %656 = vmatprep.subr.mxu0 0.0
        %657 = vmatpush2.msra.mxu0 0.0
        %658 = vmatprep.subr.mxu0 0.0
        %659 = vmatpush2.msra.mxu0 0.0
        %660 = vmatprep.subr.mxu0 0.0
        %661 = vmatpush2.msra.mxu0 0.0
        %662 = vmatprep.subr.mxu0 0.0
        %663 = vmatpush2.msra.mxu0 0.0
        %664 = vmatprep.subr.mxu0 0.0
        %665 = vmatpush2.msra.mxu0 0.0
        %666 = vmatprep.subr.mxu0 0.0
        %667 = vmatpush2.msra.mxu0 0.0
        %668 = vmatprep.subr.mxu0 0.0
        %669 = vmatpush2.msra.mxu0 0.0
        %670 = vmatprep.subr.mxu0 0.0
        %671 = vmatpush2.msra.mxu0 0.0
        %672 = vmatprep.subr.mxu0 0.0
        %673 = vmatpush2.msra.mxu0 0.0
        %674 = vmatprep.subr.mxu0 0.0
        %675 = vmatpush2.msra.mxu0 0.0
        %676 = vmatprep.subr.mxu0 0.0
        %677 = vmatpush2.msra.mxu0 0.0
        %678 = vmatprep.mubr.f32.mxu0 0.0
        %679 = vmatmul.mubr.f32.gmra.mxu0 %v612
        %v680 = vpop.f32.mrf.mxu0
        %v681 = vadd.f32 0.0, %v680
        %v682 = vpop.f32.mrf.mxu0
        %v683 = vadd.f32 0.0, %v682
        %684 = vdwg.mxu0
        %v685 = vsel %vm238, %v681, %v683
        %v686 = vadd.f32 %v608, %v685
        %v687 = vxor.u32 %v686, 2147483648
        %v688 = vmul.f32 %v687, 1.442695
        %v689 = vpow.pop %v688
        %v690 = vadd.f32 %v689, 1.0
        %v691 = vrcp.pop %v690
        %v692 = vmul.f32 1.0, %v691
        %v693 = vtanh.pop %v686
        %695 = vrot.lane.b32.xlu0 %v610, 32
        %v696 = vpop.permute.xlu0 %695
        %v698 = vmul.f32 %v692, %v696
        %700 = vrot.lane.b32.xlu0 %v693, 64
        %v701 = vpop.permute.xlu0 %700
        %v703 = vmul.f32 %v692, %v701
        %705 = vrot.lane.b32.xlu0 %v703, 32
        %v706 = vpop.permute.xlu0 %705
        %v708 = vadd.f32 %v698, %v706
        %v709 = vtanh.pop %v708
        %711 = vrot.lane.b32.xlu0 %v709, 64
        %v712 = vpop.permute.xlu0 %711
        %v714 = vmul.f32 %v692, %v712
        %716 = vrot.lane.b32.xlu0 %v714, 32
        %v717 = vpop.permute.xlu0 %716
        %719 = vst.msk [vmem:[#allocation2] sm:$0xf] %vm351, %v717
        %721 = vrot.lane.b32.xlu0 %v708, 96
        %v722 = vpop.permute.xlu0 %721
        %724 = vst.msk [vmem:[#allocation3] sm:$0xf] %vm351, %v722
        %s725 = scalar_lea.vmem %s209, 6 [#allocation9]
        %726 = vst.msk [vmem:[%s725] sm:$0x3] %vm358, %v717
        %727 = vst.msk [vmem:[%s216 - $0x2] sm:$0xc] %vm361, %v717
        %s728 = sand.u32 %s80, 1
        %s729 = scalar_lea.sflag [#allocation6], %s728
        %s730 = sand.u32 %s80, 1
        %s731 = smul.addr %s730, 8
        %s732 = scalar_lea.vmem [#allocation9], %s731
        %s733 = sand.u32 %s108, 1
        %s734 = scalar_lea.sflag [#allocation11], %s733
        %s735 = sand.u32 %s108, 1
        %s736 = smul.addr %s735, 8
        %s737 = scalar_lea.vmem [#allocation10], %s736
        // Predicated region
        $region41: #{tpu_custom_call.1} parent=27 // pred_check
          %p738 = pneg %p90
        $region42: #{tpu_custom_call.1} parent=27 // pred_check_branch
          %740 = sbr.rel (%p738) target = $region44
        $region43: #{tpu_custom_call.1} parent=27 // pred_region
          %s741 = smul.u32 4, %s25
          %s743 = ssub.s32 128, 128
          %744 = vsyncadd %s729, %s743
          %s745 = smul.addr %s741, 32
          %s746 = scalar_lea.hbm %s2, %s745
          %s747 = sshll.u32 %s732, 4
          %s748 = int_to_ptr.vmem [resolvable:$true] %s747
          %753 = dma.vmem_to_hbm [thread:$0]  %s748, 128, %s746, %s729, 32, 32, 2
        $region44: #{tpu_custom_call.1} parent=27 // pred_fallthru
          _
        // Predicated region
        $region45: #{tpu_custom_call.1} parent=27 // pred_check
          %p754 = pneg %p118
        $region46: #{tpu_custom_call.1} parent=27 // pred_check_branch
          %756 = sbr.rel (%p754) target = $region48
        $region47: #{tpu_custom_call.1} parent=27 // pred_region
          %s757 = ssub.s32 1, %s25
          %s758 = smul.u32 4, %s757
          %s760 = ssub.s32 128, 128
          %761 = vsyncadd %s734, %s760
          %s762 = smul.addr %s758, 32
          %s763 = scalar_lea.hbm %s3, %s762
          %s764 = sshll.u32 %s737, 4
          %s765 = int_to_ptr.vmem [resolvable:$true] %s764
          %770 = dma.vmem_to_hbm [thread:$0]  %s765, 128, %s763, %s734, 32, 32, 2
        $region48: #{tpu_custom_call.1} parent=27 // pred_fallthru
          _
      $region28: #{tpu_custom_call.1} parent=5 // pred_fallthru
        _
      %p771 = scmp.le.s32.totalorder 2, %s20
      // Predicated region
      $region49: #{tpu_custom_call.1} parent=5 // pred_check
        %p772 = pneg %p771
      $region50: #{tpu_custom_call.1} parent=5 // pred_check_branch
        %774 = sbr.rel (%p772) target = $region52
      $region51: #{tpu_custom_call.1} parent=5 // pred_region
        %s775 = ssub.s32 %s20, 2
        // Predicated region
        $region53: #{tpu_custom_call.1} parent=51 // pred_check
          %p776 = pneg %p96
        $region54: #{tpu_custom_call.1} parent=51 // pred_check_branch
          %778 = sbr.rel (%p776) target = $region56
        $region55: #{tpu_custom_call.1} parent=51 // pred_region
          %s779 = sand.u32 %s81, 1
          %s780 = scalar_lea.sflag [#allocation6], %s779
          %s781 = sand.u32 %s81, 1
          %s782 = smul.addr %s781, 8
          %s783 = scalar_lea.vmem [#allocation9], %s782
          %784 = dma.done %s780, 128
        $region56: #{tpu_custom_call.1} parent=51 // pred_fallthru
          _
        // Predicated region
        $region57: #{tpu_custom_call.1} parent=51 // pred_check
          %p785 = pneg %p124
        $region58: #{tpu_custom_call.1} parent=51 // pred_check_branch
          %787 = sbr.rel (%p785) target = $region60
        $region59: #{tpu_custom_call.1} parent=51 // pred_region
          %s788 = sand.u32 %s109, 1
          %s789 = scalar_lea.sflag [#allocation11], %s788
          %s790 = sand.u32 %s109, 1
          %s791 = smul.addr %s790, 8
          %s792 = scalar_lea.vmem [#allocation10], %s791
          %793 = dma.done %s789, 128
        $region60: #{tpu_custom_call.1} parent=51 // pred_fallthru
          _
      $region52: #{tpu_custom_call.1} parent=5 // pred_fallthru
        _
    $region6: #{tpu_custom_call.1} parent=1 // loop_footer
      %s24 = sadd.s32 1, %s20
    $region7: #{tpu_custom_call.1} parent=1 // loop_footer_branch
      %19 = sbr.rel target = $region3
    $region8: #{tpu_custom_call.1} parent=1 // loop_exit
      _
    %794 = vsyncpa [#allocation5], 1
    %s795 = scalar_lea.sflag [#allocation5], 1
    %796 = vsyncpa %s795, 1
    %797 = vsyncpa [#allocation8], 1
    %798 = vsyncpa [#allocation6], 1
    %s799 = scalar_lea.sflag [#allocation6], 1
    %800 = vsyncpa %s799, 1
    %801 = vsyncpa [#allocation11], 1
    %s802 = scalar_lea.sflag [#allocation11], 1
    %803 = vsyncpa %s802, 1

</llo_original>
